<compile_context>
chip_gen: v7x
topology: tpu7x:2x2x1
jax: 0.10.0
libtpu: 0.0.40
codegen_flags: <defaults>
</compile_context>

<pallas_src>
import functools

import jax
import jax.numpy as jnp
from jax import lax
from jax.experimental import pallas as pl
from jax.experimental.pallas import tpu as pltpu


def _neighbor_embed_kernel(word_ref, pos_ref, table_ref,
                           w1_ref, b1_ref, w2_ref, b2_ref, out_ref,
                           *, use_gather):
    """One grid step processes a tile of TN token rows.

    word_ref : (TN, 1)   int32   token ids
    pos_ref  : (TN, 2)   float32 position features
    table_ref: (V, D)    float32 embedding table (grid-invariant)
    w1_ref   : (2, 128)  float32 fc1 weight, laid out (in, out)
    b1_ref   : (1, 128)  float32 fc1 bias
    w2_ref   : (128, D)  float32 fc2 weight, laid out (in, out)
    b2_ref   : (1, D)    float32 fc2 bias
    out_ref  : (TN, 2*D) float32 [word_emb | pos_emb]
    """
    tn = word_ref.shape[0]
    dim = table_ref.shape[1]

    # --- word embedding lookup --------------------------------------------
    if use_gather:
        # Direct row gather from VMEM: O(1) in vocab size, no MXU round-trip.
        idx = jnp.broadcast_to(word_ref[...], (tn, dim))              # (TN, D) i32
        word_emb = jnp.take_along_axis(table_ref[...], idx, axis=0,
                                       mode="promise_in_bounds")      # (TN, D)
    else:
        # Exact fallback: one-hot matmul on the MXU (fine for tiny vocab).
        vocab = table_ref.shape[0]
        onehot = (word_ref[...] ==
                  lax.broadcasted_iota(jnp.int32, (tn, vocab), 1)
                  ).astype(jnp.float32)                               # (TN, V)
        word_emb = jnp.dot(onehot, table_ref[...],
                           preferred_element_type=jnp.float32)        # (TN, D)

    # --- position MLP -------------------------------------------------------
    # fc1 has K=2: two VPU broadcast FMAs instead of a wasteful MXU matmul.
    pos = pos_ref[...]                                                # (TN, 2)
    h = (pos[:, 0:1] * w1_ref[0:1, :] +
         pos[:, 1:2] * w1_ref[1:2, :] + b1_ref[...])                  # (TN, 128)
    h = jnp.maximum(h, 0.0)
    # TODO(synk): dropout omitted (p=0.0 / eval mode -> identity).
    p = jnp.dot(h, w2_ref[...],
                preferred_element_type=jnp.float32) + b2_ref[...]     # (TN, D)
    p = jnp.maximum(p, 0.0)

    # --- write the two halves directly (no lane-axis concat relayout) -------
    out_ref[:, :dim] = word_emb.astype(out_ref.dtype)
    out_ref[:, dim:] = p.astype(out_ref.dtype)


def _round_up(x, m):
    return pl.cdiv(x, m) * m


def neighbor_embedder(word, pos, table, w1, b1, w2, b2, *, tile_n=256):
    """word: (B, S) int32, pos: (B, S, 2) f32 -> (B, S, 2*dim) f32."""
    B, S = word.shape
    dim = table.shape[1]
    N = B * S

    # Row tile: large enough to amortize per-step overhead, clamped so tiny
    # inputs are not padded 16x, and always a multiple of 8 (sublane rule).
    tile = min(int(tile_n), _round_up(N, 8))
    tile = _round_up(tile, 8)
    n_pad = _round_up(N, tile)

    word_flat = word.reshape(N, 1).astype(jnp.int32)
    pos_flat = pos.reshape(N, 2).astype(jnp.float32)
    if n_pad != N:
        # Pad with token id 0 (a valid row) / zero positions; sliced off below.
        word_flat = jnp.pad(word_flat, ((0, n_pad - N), (0, 0)))
        pos_flat = jnp.pad(pos_flat, ((0, n_pad - N), (0, 0)))
    b1_2d = b1.reshape(1, -1).astype(jnp.float32)
    b2_2d = b2.reshape(1, -1).astype(jnp.float32)

    grid = (n_pad // tile,)
    grid_spec = pltpu.PrefetchScalarGridSpec(
        num_scalar_prefetch=0,
        grid=grid,
        in_specs=[
            pl.BlockSpec((tile, 1), lambda i: (i, 0)),             # token ids
            pl.BlockSpec((tile, 2), lambda i: (i, 0)),             # positions
            # Grid-invariant operands (full blocks).  For large vocab on v7x,
            # consider pipeline_mode=pl.Buffered(1) / bf16 table to save VMEM.
            pl.BlockSpec(table.shape, lambda i: (0, 0)),           # embed table
            pl.BlockSpec(w1.shape, lambda i: (0, 0)),              # fc1 W (2,128)
            pl.BlockSpec((1, b1_2d.shape[1]), lambda i: (0, 0)),   # fc1 b
            pl.BlockSpec(w2.shape, lambda i: (0, 0)),              # fc2 W (128,dim)
            pl.BlockSpec((1, b2_2d.shape[1]), lambda i: (0, 0)),   # fc2 b
        ],
        out_specs=pl.BlockSpec((tile, 2 * dim), lambda i: (i, 0)),
    )
    compiler_params = pltpu.CompilerParams(dimension_semantics=("parallel",))
    out_shape = jax.ShapeDtypeStruct((n_pad, 2 * dim), jnp.float32)

    def _call(use_gather):
        kernel = functools.partial(_neighbor_embed_kernel, use_gather=use_gather)
        return pl.pallas_call(kernel, out_shape=out_shape, grid_spec=grid_spec,
                              compiler_params=compiler_params)(
            word_flat, pos_flat, table, w1, b1_2d, w2, b2_2d)

    try:
        out = jax.block_until_ready(_call(True))
    except Exception:
        # TODO(synk): this jax/Mosaic build cannot lower the in-kernel row
        # gather; fall back to the exact one-hot MXU lookup.
        out = jax.block_until_ready(_call(False))

    return out[:N].reshape(B, S, 2 * dim)


def _reference(word, pos, table, w1, b1, w2, b2):
    word_emb = table[word]                                   # (B, S, D)
    h = jnp.maximum(pos @ w1 + b1, 0.0)                      # (B, S, 128)
    p = jnp.maximum(h @ w2 + b2, 0.0)                        # (B, S, D)
    return jnp.concatenate([word_emb, p], axis=-1)


if __name__ == "__main__":
    # Small, deterministic synthetic setup.
    vocab_size = 50
    dim = 32
    batch, seq = 2, 8

    key = jax.random.PRNGKey(0)
    k_tab, k_w1, k_b1, k_w2, k_b2, k_word, k_pos = jax.random.split(key, 7)

    # Parameters (PyTorch Linear stores (out,in); we keep (in,out) for x @ W).
    table = jax.random.normal(k_tab, (vocab_size, dim), jnp.float32)
    w1 = jax.random.normal(k_w1, (2, 128), jnp.float32) * 0.1     # fc1: 2 -> 128
    b1 = jax.random.normal(k_b1, (128,), jnp.float32) * 0.1
    w2 = jax.random.normal(k_w2, (128, dim), jnp.float32) * 0.1   # fc2: 128 -> dim
    b2 = jax.random.normal(k_b2, (dim,), jnp.float32) * 0.1

    # Inputs.
    word = jax.random.randint(k_word, (batch, seq), 0, vocab_size, jnp.int32)
    pos = jax.random.normal(k_pos, (batch, seq, 2), jnp.float32)

    out = neighbor_embedder(word, pos, table, w1, b1, w2, b2)
    out = jax.block_until_ready(out)

    ref = _reference(word, pos, table, w1, b1, w2, b2)
    assert out.shape == (batch, seq, 2 * dim), out.shape
    # fc1 runs on the VPU in-kernel (vs XLA matmul in the reference) -> allow
    # tiny rounding differences.
    assert jnp.allclose(out, ref, atol=1e-5, rtol=1e-4), "mismatch vs reference"

    print("KERNEL_OK")
</pallas_src>

<mosaic_0001>
module attributes {stable_mosaic.version = 11 : i64} {
  func.func @_neighbor_embed_kernel(%arg0: i32, %arg1: memref<16x1xi32, #tpu.memory_space<vmem>>, %arg2: memref<16x2xf32, #tpu.memory_space<vmem>>, %arg3: memref<50x32xf32, #tpu.memory_space<vmem>>, %arg4: memref<2x128xf32, #tpu.memory_space<vmem>>, %arg5: memref<1x128xf32, #tpu.memory_space<vmem>>, %arg6: memref<128x32xf32, #tpu.memory_space<vmem>>, %arg7: memref<1x32xf32, #tpu.memory_space<vmem>>, %arg8: memref<16x64xf32, #tpu.memory_space<vmem>>) attributes {dimension_semantics = [#tpu.dimension_semantics<parallel>], iteration_bounds = array<i64: 1>, scalar_prefetch = 0 : i64, scratch_operands = 0 : i64, tpu.core_type = #tpu.core_type<tc>, window_params = [{transform_indices = @transform_0, window_bounds = array<i64: 16, 1>}, {transform_indices = @transform_1, window_bounds = array<i64: 16, 2>}, {pipeline_mode = #tpu.pipeline_mode<synchronous>, transform_indices = @transform_2, window_bounds = array<i64: 50, 32>}, {pipeline_mode = #tpu.pipeline_mode<synchronous>, transform_indices = @transform_3, window_bounds = array<i64: 2, 128>}, {pipeline_mode = #tpu.pipeline_mode<synchronous>, transform_indices = @transform_4, window_bounds = array<i64: 1, 128>}, {pipeline_mode = #tpu.pipeline_mode<synchronous>, transform_indices = @transform_5, window_bounds = array<i64: 128, 32>}, {pipeline_mode = #tpu.pipeline_mode<synchronous>, transform_indices = @transform_6, window_bounds = array<i64: 1, 32>}, {transform_indices = @transform_7, window_bounds = array<i64: 16, 64>}]} {
    %c0 = arith.constant 0 : index
    %c0_0 = arith.constant 0 : index
    %0 = vector.load %arg1[%c0, %c0_0] : memref<16x1xi32, #tpu.memory_space<vmem>>, vector<16x1xi32>
    %1 = vector.shape_cast %0 : vector<16x1xi32> to vector<16x1xi32>
    %2 = vector.broadcast %1 : vector<16x1xi32> to vector<16x32xi32>
    %c0_1 = arith.constant 0 : index
    %c0_2 = arith.constant 0 : index
    %3 = vector.load %arg3[%c0_1, %c0_2] : memref<50x32xf32, #tpu.memory_space<vmem>>, vector<50x32xf32>
    %4 = vector.shape_cast %2 : vector<16x32xi32> to vector<16x32x1xi32>
    %5 = vector.shape_cast %4 : vector<16x32x1xi32> to vector<16x32xi32>
    %6 = tpu.dynamic_gather %3[%5] in [0] : vector<50x32xf32>, vector<16x32xi32> -> vector<16x32xf32>
    %c0_3 = arith.constant 0 : index
    %c0_4 = arith.constant 0 : index
    %7 = vector.load %arg2[%c0_3, %c0_4] : memref<16x2xf32, #tpu.memory_space<vmem>>, vector<16x2xf32>
    %8 = vector.extract_strided_slice %7 {offsets = [0, 0], sizes = [16, 1], strides = [1, 1]} : vector<16x2xf32> to vector<16x1xf32>
    %c0_5 = arith.constant 0 : index
    %c0_6 = arith.constant 0 : index
    %9 = vector.load %arg4[%c0_5, %c0_6] : memref<2x128xf32, #tpu.memory_space<vmem>>, vector<1x128xf32>
    %10 = vector.broadcast %8 : vector<16x1xf32> to vector<16x128xf32>
    %11 = vector.broadcast %9 : vector<1x128xf32> to vector<16x128xf32>
    %12 = arith.mulf %10, %11 : vector<16x128xf32>
    %13 = vector.extract_strided_slice %7 {offsets = [0, 1], sizes = [16, 1], strides = [1, 1]} : vector<16x2xf32> to vector<16x1xf32>
    %c1 = arith.constant 1 : index
    %c0_7 = arith.constant 0 : index
    %14 = vector.load %arg4[%c1, %c0_7] : memref<2x128xf32, #tpu.memory_space<vmem>>, vector<1x128xf32>
    %15 = vector.broadcast %13 : vector<16x1xf32> to vector<16x128xf32>
    %16 = vector.broadcast %14 : vector<1x128xf32> to vector<16x128xf32>
    %17 = arith.mulf %15, %16 : vector<16x128xf32>
    %18 = arith.addf %12, %17 : vector<16x128xf32>
    %c0_8 = arith.constant 0 : index
    %c0_9 = arith.constant 0 : index
    %19 = vector.load %arg5[%c0_8, %c0_9] : memref<1x128xf32, #tpu.memory_space<vmem>>, vector<1x128xf32>
    %20 = vector.broadcast %19 : vector<1x128xf32> to vector<16x128xf32>
    %21 = arith.addf %18, %20 : vector<16x128xf32>
    %cst = arith.constant 0.000000e+00 : f32
    %22 = vector.broadcast %cst : f32 to vector<16x128xf32>
    %23 = arith.maximumf %21, %22 : vector<16x128xf32>
    %c0_10 = arith.constant 0 : index
    %c0_11 = arith.constant 0 : index
    %24 = vector.load %arg6[%c0_10, %c0_11] : memref<128x32xf32, #tpu.memory_space<vmem>>, vector<128x32xf32>
    %cst_12 = arith.constant dense<0.000000e+00> : vector<16x32xf32>
    %25 = tpu.matmul %23, %24, %cst_12 {dimension_numbers = #tpu.dot_dimension_numbers<[1], [0], [0], [1], [0, 0, 1, 1], [], []>} : vector<16x128xf32>, vector<128x32xf32>, vector<16x32xf32> -> vector<16x32xf32>
    %c0_13 = arith.constant 0 : index
    %c0_14 = arith.constant 0 : index
    %26 = vector.load %arg7[%c0_13, %c0_14] : memref<1x32xf32, #tpu.memory_space<vmem>>, vector<1x32xf32>
    %27 = vector.broadcast %26 : vector<1x32xf32> to vector<16x32xf32>
    %28 = arith.addf %25, %27 : vector<16x32xf32>
    %cst_15 = arith.constant 0.000000e+00 : f32
    %29 = vector.broadcast %cst_15 : f32 to vector<16x32xf32>
    %30 = arith.maximumf %28, %29 : vector<16x32xf32>
    %c0_16 = arith.constant 0 : index
    %c0_17 = arith.constant 0 : index
    %31 = vector.load %arg8[%c0_16, %c0_17] : memref<16x64xf32, #tpu.memory_space<vmem>>, vector<16x32xf32>
    tpu.vector_store %arg8[%c0_16, %c0_17], %6 {strides = array<i32>} : memref<16x64xf32, #tpu.memory_space<vmem>>, vector<16x32xf32>,
    %c0_18 = arith.constant 0 : index
    %c32 = arith.constant 32 : index
    %32 = vector.load %arg8[%c0_18, %c32] : memref<16x64xf32, #tpu.memory_space<vmem>>, vector<16x32xf32>
    tpu.vector_store %arg8[%c0_18, %c32], %30 {strides = array<i32>} : memref<16x64xf32, #tpu.memory_space<vmem>>, vector<16x32xf32>,
    return
  }
  func.func @transform_0(%arg0: i32) -> (i32, i32) {
    %c0_i32 = arith.constant 0 : i32
    %c0_i32_0 = arith.constant 0 : i32
    return %arg0, %c0_i32 : i32, i32
  }
  func.func @transform_1(%arg0: i32) -> (i32, i32) {
    %c0_i32 = arith.constant 0 : i32
    %c0_i32_0 = arith.constant 0 : i32
    return %arg0, %c0_i32 : i32, i32
  }
  func.func @transform_2(%arg0: i32) -> (i32, i32) {
    %c0_i32 = arith.constant 0 : i32
    %c0_i32_0 = arith.constant 0 : i32
    %c0_i32_1 = arith.constant 0 : i32
    return %c0_i32, %c0_i32_0 : i32, i32
  }
  func.func @transform_3(%arg0: i32) -> (i32, i32) {
    %c0_i32 = arith.constant 0 : i32
    %c0_i32_0 = arith.constant 0 : i32
    %c0_i32_1 = arith.constant 0 : i32
    return %c0_i32, %c0_i32_0 : i32, i32
  }
  func.func @transform_4(%arg0: i32) -> (i32, i32) {
    %c0_i32 = arith.constant 0 : i32
    %c0_i32_0 = arith.constant 0 : i32
    %c0_i32_1 = arith.constant 0 : i32
    return %c0_i32, %c0_i32_0 : i32, i32
  }
  func.func @transform_5(%arg0: i32) -> (i32, i32) {
    %c0_i32 = arith.constant 0 : i32
    %c0_i32_0 = arith.constant 0 : i32
    %c0_i32_1 = arith.constant 0 : i32
    return %c0_i32, %c0_i32_0 : i32, i32
  }
  func.func @transform_6(%arg0: i32) -> (i32, i32) {
    %c0_i32 = arith.constant 0 : i32
    %c0_i32_0 = arith.constant 0 : i32
    %c0_i32_1 = arith.constant 0 : i32
    return %c0_i32, %c0_i32_0 : i32, i32
  }
  func.func @transform_7(%arg0: i32) -> (i32, i32) {
    %c0_i32 = arith.constant 0 : i32
    %c0_i32_0 = arith.constant 0 : i32
    return %arg0, %c0_i32 : i32, i32
  }
}

module attributes {stable_mosaic.version = 11 : i64} {
  func.func @_neighbor_embed_kernel(%arg0: i32, %arg1: memref<16x1xi32, #tpu.memory_space<vmem>>, %arg2: memref<16x2xf32, #tpu.memory_space<vmem>>, %arg3: memref<50x32xf32, #tpu.memory_space<vmem>>, %arg4: memref<2x128xf32, #tpu.memory_space<vmem>>, %arg5: memref<1x128xf32, #tpu.memory_space<vmem>>, %arg6: memref<128x32xf32, #tpu.memory_space<vmem>>, %arg7: memref<1x32xf32, #tpu.memory_space<vmem>>, %arg8: memref<16x64xf32, #tpu.memory_space<vmem>>) attributes {dimension_semantics = [#tpu.dimension_semantics<parallel>], iteration_bounds = array<i64: 1>, scalar_prefetch = 0 : i64, scratch_operands = 0 : i64, tpu.core_type = #tpu.core_type<tc>, window_params = [{transform_indices = @transform_0, window_bounds = array<i64: 16, 1>}, {transform_indices = @transform_1, window_bounds = array<i64: 16, 2>}, {pipeline_mode = #tpu.pipeline_mode<synchronous>, transform_indices = @transform_2, window_bounds = array<i64: 50, 32>}, {pipeline_mode = #tpu.pipeline_mode<synchronous>, transform_indices = @transform_3, window_bounds = array<i64: 2, 128>}, {pipeline_mode = #tpu.pipeline_mode<synchronous>, transform_indices = @transform_4, window_bounds = array<i64: 1, 128>}, {pipeline_mode = #tpu.pipeline_mode<synchronous>, transform_indices = @transform_5, window_bounds = array<i64: 128, 32>}, {pipeline_mode = #tpu.pipeline_mode<synchronous>, transform_indices = @transform_6, window_bounds = array<i64: 1, 32>}, {transform_indices = @transform_7, window_bounds = array<i64: 16, 64>}]} {
    %c0 = arith.constant 0 : index
    %c0_0 = arith.constant 0 : index
    %0 = vector.load %arg1[%c0, %c0_0] : memref<16x1xi32, #tpu.memory_space<vmem>>, vector<16x1xi32>
    %1 = tpu.iota {dimensions = array<i32: 1>} : vector<16x50xi32>
    %2 = vector.broadcast %0 : vector<16x1xi32> to vector<16x50xi32>
    %3 = arith.cmpi eq, %2, %1 : vector<16x50xi32>
    %4 = arith.extui %3 : vector<16x50xi1> to vector<16x50xi32>
    %5 = arith.sitofp %4 : vector<16x50xi32> to vector<16x50xf32>
    %c0_1 = arith.constant 0 : index
    %c0_2 = arith.constant 0 : index
    %6 = vector.load %arg3[%c0_1, %c0_2] : memref<50x32xf32, #tpu.memory_space<vmem>>, vector<50x32xf32>
    %cst = arith.constant dense<0.000000e+00> : vector<16x32xf32>
    %7 = tpu.matmul %5, %6, %cst {dimension_numbers = #tpu.dot_dimension_numbers<[1], [0], [0], [1], [0, 0, 1, 1], [], []>} : vector<16x50xf32>, vector<50x32xf32>, vector<16x32xf32> -> vector<16x32xf32>
    %c0_3 = arith.constant 0 : index
    %c0_4 = arith.constant 0 : index
    %8 = vector.load %arg2[%c0_3, %c0_4] : memref<16x2xf32, #tpu.memory_space<vmem>>, vector<16x2xf32>
    %9 = vector.extract_strided_slice %8 {offsets = [0, 0], sizes = [16, 1], strides = [1, 1]} : vector<16x2xf32> to vector<16x1xf32>
    %c0_5 = arith.constant 0 : index
    %c0_6 = arith.constant 0 : index
    %10 = vector.load %arg4[%c0_5, %c0_6] : memref<2x128xf32, #tpu.memory_space<vmem>>, vector<1x128xf32>
    %11 = vector.broadcast %9 : vector<16x1xf32> to vector<16x128xf32>
    %12 = vector.broadcast %10 : vector<1x128xf32> to vector<16x128xf32>
    %13 = arith.mulf %11, %12 : vector<16x128xf32>
    %14 = vector.extract_strided_slice %8 {offsets = [0, 1], sizes = [16, 1], strides = [1, 1]} : vector<16x2xf32> to vector<16x1xf32>
    %c1 = arith.constant 1 : index
    %c0_7 = arith.constant 0 : index
    %15 = vector.load %arg4[%c1, %c0_7] : memref<2x128xf32, #tpu.memory_space<vmem>>, vector<1x128xf32>
    %16 = vector.broadcast %14 : vector<16x1xf32> to vector<16x128xf32>
    %17 = vector.broadcast %15 : vector<1x128xf32> to vector<16x128xf32>
    %18 = arith.mulf %16, %17 : vector<16x128xf32>
    %19 = arith.addf %13, %18 : vector<16x128xf32>
    %c0_8 = arith.constant 0 : index
    %c0_9 = arith.constant 0 : index
    %20 = vector.load %arg5[%c0_8, %c0_9] : memref<1x128xf32, #tpu.memory_space<vmem>>, vector<1x128xf32>
    %21 = vector.broadcast %20 : vector<1x128xf32> to vector<16x128xf32>
    %22 = arith.addf %19, %21 : vector<16x128xf32>
    %cst_10 = arith.constant 0.000000e+00 : f32
    %23 = vector.broadcast %cst_10 : f32 to vector<16x128xf32>
    %24 = arith.maximumf %22, %23 : vector<16x128xf32>
    %c0_11 = arith.constant 0 : index
    %c0_12 = arith.constant 0 : index
    %25 = vector.load %arg6[%c0_11, %c0_12] : memref<128x32xf32, #tpu.memory_space<vmem>>, vector<128x32xf32>
    %cst_13 = arith.constant dense<0.000000e+00> : vector<16x32xf32>
    %26 = tpu.matmul %24, %25, %cst_13 {dimension_numbers = #tpu.dot_dimension_numbers<[1], [0], [0], [1], [0, 0, 1, 1], [], []>} : vector<16x128xf32>, vector<128x32xf32>, vector<16x32xf32> -> vector<16x32xf32>
    %c0_14 = arith.constant 0 : index
    %c0_15 = arith.constant 0 : index
    %27 = vector.load %arg7[%c0_14, %c0_15] : memref<1x32xf32, #tpu.memory_space<vmem>>, vector<1x32xf32>
    %28 = vector.broadcast %27 : vector<1x32xf32> to vector<16x32xf32>
    %29 = arith.addf %26, %28 : vector<16x32xf32>
    %cst_16 = arith.constant 0.000000e+00 : f32
    %30 = vector.broadcast %cst_16 : f32 to vector<16x32xf32>
    %31 = arith.maximumf %29, %30 : vector<16x32xf32>
    %c0_17 = arith.constant 0 : index
    %c0_18 = arith.constant 0 : index
    %32 = vector.load %arg8[%c0_17, %c0_18] : memref<16x64xf32, #tpu.memory_space<vmem>>, vector<16x32xf32>
    tpu.vector_store %arg8[%c0_17, %c0_18], %7 {strides = array<i32>} : memref<16x64xf32, #tpu.memory_space<vmem>>, vector<16x32xf32>,
    %c0_19 = arith.constant 0 : index
    %c32 = arith.constant 32 : index
    %33 = vector.load %arg8[%c0_19, %c32] : memref<16x64xf32, #tpu.memory_space<vmem>>, vector<16x32xf32>
    tpu.vector_store %arg8[%c0_19, %c32], %31 {strides = array<i32>} : memref<16x64xf32, #tpu.memory_space<vmem>>, vector<16x32xf32>,
    return
  }
  func.func @transform_0(%arg0: i32) -> (i32, i32) {
    %c0_i32 = arith.constant 0 : i32
    %c0_i32_0 = arith.constant 0 : i32
    return %arg0, %c0_i32 : i32, i32
  }
  func.func @transform_1(%arg0: i32) -> (i32, i32) {
    %c0_i32 = arith.constant 0 : i32
    %c0_i32_0 = arith.constant 0 : i32
    return %arg0, %c0_i32 : i32, i32
  }
  func.func @transform_2(%arg0: i32) -> (i32, i32) {
    %c0_i32 = arith.constant 0 : i32
    %c0_i32_0 = arith.constant 0 : i32
    %c0_i32_1 = arith.constant 0 : i32
    return %c0_i32, %c0_i32_0 : i32, i32
  }
  func.func @transform_3(%arg0: i32) -> (i32, i32) {
    %c0_i32 = arith.constant 0 : i32
    %c0_i32_0 = arith.constant 0 : i32
    %c0_i32_1 = arith.constant 0 : i32
    return %c0_i32, %c0_i32_0 : i32, i32
  }
  func.func @transform_4(%arg0: i32) -> (i32, i32) {
    %c0_i32 = arith.constant 0 : i32
    %c0_i32_0 = arith.constant 0 : i32
    %c0_i32_1 = arith.constant 0 : i32
    return %c0_i32, %c0_i32_0 : i32, i32
  }
  func.func @transform_5(%arg0: i32) -> (i32, i32) {
    %c0_i32 = arith.constant 0 : i32
    %c0_i32_0 = arith.constant 0 : i32
    %c0_i32_1 = arith.constant 0 : i32
    return %c0_i32, %c0_i32_0 : i32, i32
  }
  func.func @transform_6(%arg0: i32) -> (i32, i32) {
    %c0_i32 = arith.constant 0 : i32
    %c0_i32_0 = arith.constant 0 : i32
    %c0_i32_1 = arith.constant 0 : i32
    return %c0_i32, %c0_i32_0 : i32, i32
  }
  func.func @transform_7(%arg0: i32) -> (i32, i32) {
    %c0_i32 = arith.constant 0 : i32
    %c0_i32_0 = arith.constant 0 : i32
    return %arg0, %c0_i32 : i32, i32
  }
}

</mosaic_0001>

<llo_original>
// kernel: tpu_custom_call.1
$region0: #{tpu_custom_call.1}
  #allocation0 [shape = 'u32[]', space=smem, size = 0x4, offset = 0x4, fixed_abs, tag = 'smem constant byte address 0x4 - core index']
  #allocation1 [shape = 'u32[144,128]{1,0:T(1,128)}', space=vmem, size = 0x12000, scoped, tag = 'internal scratch']
  %s0 = inlined_call_operand.vmem [shape: s32[16,1], index: 0, kind: input, shape index: {}]
  %s1 = inlined_call_operand.vmem [shape: f32[16,2], index: 1, kind: input, shape index: {}]
  %s2 = inlined_call_operand.vmem [shape: f32[50,32], index: 2, kind: input, shape index: {}]
  %s3 = inlined_call_operand.vmem [shape: f32[2,128], index: 3, kind: input, shape index: {}]
  %s4 = inlined_call_operand.vmem [shape: f32[1,128], index: 4, kind: input, shape index: {}]
  %s5 = inlined_call_operand.vmem [shape: f32[128,32], index: 5, kind: input, shape index: {}]
  %s6 = inlined_call_operand.vmem [shape: f32[1,32], index: 6, kind: input, shape index: {}]
  %s7 = inlined_call_operand.hbm [shape: f32[16,64], index: 7, kind: output, shape index: {}]
  %s8 = sld [smem:[#allocation0]]
  $region38: #{tpu_custom_call.1} parent=0
    _
  %s10 = ssub.s32 1, %s8
  %s11 = scalar_select 0, %s10, %s8
  $region1: #{tpu_custom_call.1} parent=0
    #allocation2 [shape = 'u8[8192]{0}', space=vmem, size = 0x2000, scoped, tag = 'output window, operand 0, single buffered']
    #allocation3 [shape = 's32[1]{0}', space=sflag, size = 0x4, scoped, tag = 'scoped memory for tpu_custom_call.1']
    %12 = vsyncpa [#allocation3], 0
    // Predicated region
    $region2: #{tpu_custom_call.1} parent=1 // pred_check
      _
    $region3: #{tpu_custom_call.1} parent=1 // pred_check_branch
      %14 = sbr.rel (0) target = $region5
    $region4: #{tpu_custom_call.1} parent=1 // pred_region
      _
    $region5: #{tpu_custom_call.1} parent=1 // pred_fallthru
      _
    // Predicated region
    $region6: #{tpu_custom_call.1} parent=1 // pred_check
      _
    $region7: #{tpu_custom_call.1} parent=1 // pred_check_branch
      %16 = sbr.rel (0) target = $region9
    $region8: #{tpu_custom_call.1} parent=1 // pred_region
      _
    $region9: #{tpu_custom_call.1} parent=1 // pred_fallthru
      _
    // Predicated region
    $region10: #{tpu_custom_call.1} parent=1 // pred_check
      _
    $region11: #{tpu_custom_call.1} parent=1 // pred_check_branch
      %18 = sbr.rel (0) target = $region13
    $region12: #{tpu_custom_call.1} parent=1 // pred_region
      _
    $region13: #{tpu_custom_call.1} parent=1 // pred_fallthru
      _
    // Predicated region
    $region14: #{tpu_custom_call.1} parent=1 // pred_check
      _
    $region15: #{tpu_custom_call.1} parent=1 // pred_check_branch
      %20 = sbr.rel (0) target = $region17
    $region16: #{tpu_custom_call.1} parent=1 // pred_region
      _
    $region17: #{tpu_custom_call.1} parent=1 // pred_fallthru
      _
    // Predicated region
    $region18: #{tpu_custom_call.1} parent=1 // pred_check
      _
    $region19: #{tpu_custom_call.1} parent=1 // pred_check_branch
      %22 = sbr.rel (0) target = $region21
    $region20: #{tpu_custom_call.1} parent=1 // pred_region
      _
    $region21: #{tpu_custom_call.1} parent=1 // pred_fallthru
      _
    // Predicated region
    $region22: #{tpu_custom_call.1} parent=1 // pred_check
      _
    $region23: #{tpu_custom_call.1} parent=1 // pred_check_branch
      %24 = sbr.rel (0) target = $region25
    $region24: #{tpu_custom_call.1} parent=1 // pred_region
      _
    $region25: #{tpu_custom_call.1} parent=1 // pred_fallthru
      _
    // Predicated region
    $region26: #{tpu_custom_call.1} parent=1 // pred_check
      _
    $region27: #{tpu_custom_call.1} parent=1 // pred_check_branch
      %26 = sbr.rel (0) target = $region29
    $region28: #{tpu_custom_call.1} parent=1 // pred_region
      _
    $region29: #{tpu_custom_call.1} parent=1 // pred_fallthru
      _
    %v27 = vld [vmem:[%s0] sm:$0xff]
    %v28 = vld [vmem:[%s0 + $0x8] sm:$0xff]
    %v29 = vlaneseq
    %v30 = vand.u32 %v29, 127
    %31 = vset.pattern.permute.xlu0 0
    %32 = vperm.xlu0 %31, %v27
    %v33 = vpop.permute.xlu0 %32
    %34 = vset.pattern.permute.xlu0 0
    %35 = vperm.xlu0 %34, %v28
    %v36 = vpop.permute.xlu0 %35
    %vm37 = vcmp.eq.s32.totalorder %v33, %v30
    %vm38 = vcmp.eq.s32.totalorder %v36, %v30
    %v39 = vsel %vm37, 1, 0
    %v40 = vsel %vm38, 1, 0
    %v41 = vcvt.s32.f32 %v39
    %v42 = vcvt.s32.f32 %v40
    %v43 = vld [vmem:[%s2] sm:$0xff]
    %v44 = vld [vmem:[%s2 + $0x8] sm:$0xff]
    %v45 = vld [vmem:[%s2 + $0x10] sm:$0xff]
    %v46 = vld [vmem:[%s2 + $0x18] sm:$0xff]
    %v47 = vld [vmem:[%s2 + $0x20] sm:$0xff]
    %v48 = vld [vmem:[%s2 + $0x28] sm:$0xff]
    %v49 = vld [vmem:[%s2 + $0x30] sm:$0x3]
    %vm50 = vcmask 408576
    %v52 = vsel %vm50, %v41, 0
    %v55 = vsel %vm50, %v42, 0
    %vm57 = vcmask 1041408
    %v59 = vsel %vm57, %v49, 0
    %61 = vmatprep.subr.mxu0 0.0
    %62 = vmatpush1.msra.mxu0 %v43
    %63 = vmatprep.subr.mxu0 0.0
    %64 = vmatpush1.msra.mxu0 %v44
    %65 = vmatprep.subr.mxu0 0.0
    %66 = vmatpush1.msra.mxu0 %v45
    %67 = vmatprep.subr.mxu0 0.0
    %68 = vmatpush1.msra.mxu0 %v46
    %69 = vmatprep.subr.mxu0 0.0
    %70 = vmatpush1.msra.mxu0 %v47
    %71 = vmatprep.subr.mxu0 0.0
    %72 = vmatpush1.msra.mxu0 %v48
    %73 = vmatprep.subr.mxu0 0.0
    %74 = vmatpush1.msra.mxu0 %v59
    %75 = vmatprep.subr.mxu0 0.0
    %76 = vmatpush1.msra.mxu0 0.0
    %77 = vmatprep.subr.mxu0 0.0
    %78 = vmatpush1.msra.mxu0 0.0
    %79 = vmatprep.subr.mxu0 0.0
    %80 = vmatpush1.msra.mxu0 0.0
    %81 = vmatprep.subr.mxu0 0.0
    %82 = vmatpush1.msra.mxu0 0.0
    %83 = vmatprep.subr.mxu0 0.0
    %84 = vmatpush1.msra.mxu0 0.0
    %85 = vmatprep.subr.mxu0 0.0
    %86 = vmatpush1.msra.mxu0 0.0
    %87 = vmatprep.subr.mxu0 0.0
    %88 = vmatpush1.msra.mxu0 0.0
    %89 = vmatprep.subr.mxu0 0.0
    %90 = vmatpush1.msra.mxu0 0.0
    %91 = vmatprep.subr.mxu0 0.0
    %92 = vmatpush1.msra.mxu0 0.0
    %93 = vmatprep.subr.mxu0 0.0
    %94 = vmatpush1.msra.mxu0 0.0
    %95 = vmatprep.subr.mxu0 0.0
    %96 = vmatpush1.msra.mxu0 0.0
    %97 = vmatprep.subr.mxu0 0.0
    %98 = vmatpush1.msra.mxu0 0.0
    %99 = vmatprep.subr.mxu0 0.0
    %100 = vmatpush1.msra.mxu0 0.0
    %101 = vmatprep.subr.mxu0 0.0
    %102 = vmatpush1.msra.mxu0 0.0
    %103 = vmatprep.subr.mxu0 0.0
    %104 = vmatpush1.msra.mxu0 0.0
    %105 = vmatprep.subr.mxu0 0.0
    %106 = vmatpush1.msra.mxu0 0.0
    %107 = vmatprep.subr.mxu0 0.0
    %108 = vmatpush1.msra.mxu0 0.0
    %109 = vmatprep.subr.mxu0 0.0
    %110 = vmatpush1.msra.mxu0 0.0
    %111 = vmatprep.subr.mxu0 0.0
    %112 = vmatpush1.msra.mxu0 0.0
    %113 = vmatprep.subr.mxu0 0.0
    %114 = vmatpush1.msra.mxu0 0.0
    %115 = vmatprep.subr.mxu0 0.0
    %116 = vmatpush1.msra.mxu0 0.0
    %117 = vmatprep.subr.mxu0 0.0
    %118 = vmatpush1.msra.mxu0 0.0
    %119 = vmatprep.subr.mxu0 0.0
    %120 = vmatpush1.msra.mxu0 0.0
    %121 = vmatprep.subr.mxu0 0.0
    %122 = vmatpush1.msra.mxu0 0.0
    %123 = vmatprep.subr.mxu0 0.0
    %124 = vmatpush1.msra.mxu0 0.0
    %125 = vmatprep.mubr.f32.mxu0 0.0
    %126 = vmatmul.mubr.f32.gmra.mrb[0].mxu0 %v52
    %v127 = vpop.f32.mrb[0].mxu0
    %v128 = vadd.f32 0.0, %v127
    %v129 = vpop.f32.mrb[0].mxu0
    %130 = vmatprep.mubr.f32.mxu0 0.0
    %131 = vmatmul.mubr.f32.gmra.mrb[0].mxu0 %v55
    %v132 = vpop.f32.mrb[0].mxu0
    %v133 = vadd.f32 0.0, %v132
    %v134 = vpop.f32.mrb[0].mxu0
    %135 = vdwg.mxu0
    %v136 = vld [vmem:[%s1] sm:$0xff]
    %v137 = vld [vmem:[%s1 + $0x8] sm:$0xff]
    %v138 = vld [vmem:[%s3] sm:$0x1]
    %140 = vset.pattern.permute.xlu0 0
    %141 = vperm.xlu0 %140, %v136
    %v142 = vpop.permute.xlu0 %141
    %145 = vset.pattern.permute.xlu0 0
    %146 = vperm.xlu0 %145, %v137
    %v147 = vpop.permute.xlu0 %146
    %v149 = vlaneseq
    %v150 = vshrl.u32 %v149, 7
    %v151 = vsub.s32 0, %v150
    %v152 = vrot.slane %v138, %v151
    %v153 = vmul.f32 %v142, %v152
    %v154 = vmul.f32 %v147, %v152
    %v155 = vld [vmem:[%s3 + $0x1] sm:$0x1]
    %156 = vset.pattern.permute.xlu0 1
    %157 = vperm.xlu0 %156, %v136
    %v158 = vpop.permute.xlu0 %157
    %160 = vset.pattern.permute.xlu0 1
    %161 = vperm.xlu0 %160, %v137
    %v162 = vpop.permute.xlu0 %161
    %v164 = vlaneseq
    %v165 = vshrl.u32 %v164, 7
    %v166 = vsub.s32 0, %v165
    %v167 = vrot.slane %v155, %v166
    %v168 = vmul.f32 %v158, %v167
    %v169 = vmul.f32 %v162, %v167
    %v170 = vadd.f32 %v153, %v168
    %v171 = vadd.f32 %v154, %v169
    %v172 = vld [vmem:[%s4] sm:$0x1]
    %v174 = vlaneseq
    %v175 = vshrl.u32 %v174, 7
    %v176 = vsub.s32 0, %v175
    %v177 = vrot.slane %v172, %v176
    %v179 = vadd.f32 %v170, %v177
    %v180 = vadd.f32 %v171, %v177
    %v181 = vmax.f32 %v179, 0.0
    %v182 = vmax.f32 %v180, 0.0
    %v183 = vld [vmem:[%s5] sm:$0xff]
    %v184 = vld [vmem:[%s5 + $0x8] sm:$0xff]
    %v185 = vld [vmem:[%s5 + $0x10] sm:$0xff]
    %v186 = vld [vmem:[%s5 + $0x18] sm:$0xff]
    %v187 = vld [vmem:[%s5 + $0x20] sm:$0xff]
    %v188 = vld [vmem:[%s5 + $0x28] sm:$0xff]
    %v189 = vld [vmem:[%s5 + $0x30] sm:$0xff]
    %v190 = vld [vmem:[%s5 + $0x38] sm:$0xff]
    %v191 = vld [vmem:[%s5 + $0x40] sm:$0xff]
    %v192 = vld [vmem:[%s5 + $0x48] sm:$0xff]
    %v193 = vld [vmem:[%s5 + $0x50] sm:$0xff]
    %v194 = vld [vmem:[%s5 + $0x58] sm:$0xff]
    %v195 = vld [vmem:[%s5 + $0x60] sm:$0xff]
    %v196 = vld [vmem:[%s5 + $0x68] sm:$0xff]
    %v197 = vld [vmem:[%s5 + $0x70] sm:$0xff]
    %v198 = vld [vmem:[%s5 + $0x78] sm:$0xff]
    %v199 = vld [vmem:[%s6] sm:$0x1]
    %v201 = vlaneseq
    %v202 = vshrl.u32 %v201, 7
    %v203 = vsub.s32 0, %v202
    %v204 = vrot.slane %v199, %v203
    %206 = vmatprep.subr.mxu0 0.0
    %207 = vmatpush1.msra.mxu0 %v183
    %208 = vmatprep.subr.mxu0 0.0
    %209 = vmatpush1.msra.mxu0 %v184
    %210 = vmatprep.subr.mxu0 0.0
    %211 = vmatpush1.msra.mxu0 %v185
    %212 = vmatprep.subr.mxu0 0.0
    %213 = vmatpush1.msra.mxu0 %v186
    %214 = vmatprep.subr.mxu0 0.0
    %215 = vmatpush1.msra.mxu0 %v187
    %216 = vmatprep.subr.mxu0 0.0
    %217 = vmatpush1.msra.mxu0 %v188
    %218 = vmatprep.subr.mxu0 0.0
    %219 = vmatpush1.msra.mxu0 %v189
    %220 = vmatprep.subr.mxu0 0.0
    %221 = vmatpush1.msra.mxu0 %v190
    %222 = vmatprep.subr.mxu0 0.0
    %223 = vmatpush1.msra.mxu0 %v191
    %224 = vmatprep.subr.mxu0 0.0
    %225 = vmatpush1.msra.mxu0 %v192
    %226 = vmatprep.subr.mxu0 0.0
    %227 = vmatpush1.msra.mxu0 %v193
    %228 = vmatprep.subr.mxu0 0.0
    %229 = vmatpush1.msra.mxu0 %v194
    %230 = vmatprep.subr.mxu0 0.0
    %231 = vmatpush1.msra.mxu0 %v195
    %232 = vmatprep.subr.mxu0 0.0
    %233 = vmatpush1.msra.mxu0 %v196
    %234 = vmatprep.subr.mxu0 0.0
    %235 = vmatpush1.msra.mxu0 %v197
    %236 = vmatprep.subr.mxu0 0.0
    %237 = vmatpush1.msra.mxu0 %v198
    %238 = vmatprep.subr.mxu0 0.0
    %239 = vmatpush1.msra.mxu0 0.0
    %240 = vmatprep.subr.mxu0 0.0
    %241 = vmatpush1.msra.mxu0 0.0
    %242 = vmatprep.subr.mxu0 0.0
    %243 = vmatpush1.msra.mxu0 0.0
    %244 = vmatprep.subr.mxu0 0.0
    %245 = vmatpush1.msra.mxu0 0.0
    %246 = vmatprep.subr.mxu0 0.0
    %247 = vmatpush1.msra.mxu0 0.0
    %248 = vmatprep.subr.mxu0 0.0
    %249 = vmatpush1.msra.mxu0 0.0
    %250 = vmatprep.subr.mxu0 0.0
    %251 = vmatpush1.msra.mxu0 0.0
    %252 = vmatprep.subr.mxu0 0.0
    %253 = vmatpush1.msra.mxu0 0.0
    %254 = vmatprep.subr.mxu0 0.0
    %255 = vmatpush1.msra.mxu0 0.0
    %256 = vmatprep.subr.mxu0 0.0
    %257 = vmatpush1.msra.mxu0 0.0
    %258 = vmatprep.subr.mxu0 0.0
    %259 = vmatpush1.msra.mxu0 0.0
    %260 = vmatprep.subr.mxu0 0.0
    %261 = vmatpush1.msra.mxu0 0.0
    %262 = vmatprep.subr.mxu0 0.0
    %263 = vmatpush1.msra.mxu0 0.0
    %264 = vmatprep.subr.mxu0 0.0
    %265 = vmatpush1.msra.mxu0 0.0
    %266 = vmatprep.subr.mxu0 0.0
    %267 = vmatpush1.msra.mxu0 0.0
    %268 = vmatprep.subr.mxu0 0.0
    %269 = vmatpush1.msra.mxu0 0.0
    %270 = vmatprep.mubr.f32.mxu0 0.0
    %271 = vmatmul.mubr.f32.gmra.mrb[0].mxu0 %v181
    %v272 = vpop.f32.mrb[0].mxu0
    %v273 = vadd.f32 %v204, %v272
    %v274 = vpop.f32.mrb[0].mxu0
    %275 = vmatprep.mubr.f32.mxu0 0.0
    %276 = vmatmul.mubr.f32.gmra.mrb[0].mxu0 %v182
    %v277 = vpop.f32.mrb[0].mxu0
    %v278 = vadd.f32 %v204, %v277
    %v279 = vpop.f32.mrb[0].mxu0
    %280 = vdwg.mxu0
    %v281 = vmax.f32 %v273, 0.0
    %v282 = vmax.f32 %v278, 0.0
    %vm283 = vcmask 261120
    %284 = vst.msk [vmem:[#allocation2] sm:$0xff] %vm283, %v128
    %285 = vst.msk [vmem:[#allocation2 + $0x8] sm:$0xff] %vm283, %v133
    %288 = vrot.lane.b32.xlu0 %v281, 32
    %v289 = vpop.permute.xlu0 %288
    %290 = vrot.lane.b32.xlu0 %v282, 32
    %v291 = vpop.permute.xlu0 %290
    %vm294 = vcmask 523520
    %295 = vst.msk [vmem:[#allocation2] sm:$0xff] %vm294, %v289
    %296 = vst.msk [vmem:[#allocation2 + $0x8] sm:$0xff] %vm294, %v291
    // Predicated region
    $region30: #{tpu_custom_call.1} parent=1 // pred_check
      _
    $region31: #{tpu_custom_call.1} parent=1 // pred_check_branch
      %298 = sbr.rel (0) target = $region33
    $region32: #{tpu_custom_call.1} parent=1 // pred_region
      %s300 = ssub.s32 256, 256
      %301 = vsyncadd [#allocation3], %s300
      %s302 = sshll.u32 [#allocation2], 4
      %s303 = int_to_ptr.vmem [resolvable:$true] %s302
      %308 = dma.vmem_to_hbm [thread:$0]  %s303, 256, %s7, [#allocation3], 128, 128, 8
    $region33: #{tpu_custom_call.1} parent=1 // pred_fallthru
      _
    // Predicated region
    $region34: #{tpu_custom_call.1} parent=1 // pred_check
      _
    $region35: #{tpu_custom_call.1} parent=1 // pred_check_branch
      %310 = sbr.rel (0) target = $region37
    $region36: #{tpu_custom_call.1} parent=1 // pred_region
      %311 = dma.done [#allocation3], 256
    $region37: #{tpu_custom_call.1} parent=1 // pred_fallthru
      _
    %312 = vsyncpa [#allocation3], 1

</llo_original>
